<compile_context>
chip_gen: v6e
topology: v6e:2x2x1
jax: 0.10.0
libtpu: 0.0.40
codegen_flags: <defaults>
</compile_context>

<pallas_src>
import functools

import numpy as np

import jax
import jax.numpy as jnp
from jax.experimental import pallas as pl
from jax.experimental.pallas import tpu as pltpu


def _round_up(x, m):
    return (x + m - 1) // m * m


def _build_kernel_weights(params, *, num_heads, num_kv_heads, head_dim,
                          num_neighbors, r_hidden, scaler):
    """Precompute expanded weights/selectors so the kernel is pure matmuls.

    Column convention for the "big" (lane-dense) layout:
        c = h * (N*D) + i * D + d          with  h: head, i: neighbor slot, d: head dim
    so for the test config HND = 4*4*8 = 128 == one full vreg of lanes.
    """
    H, Hkv, D, N = num_heads, num_kv_heads, head_dim, num_neighbors
    G = H // Hkv
    ND = N * D
    HND = H * ND
    KVD = Hkv * D

    c = np.arange(HND)
    h_idx = c // ND
    i_idx = (c % ND) // D
    d_idx = c % D
    qo_row = h_idx * D + d_idx                    # row of q_proj / o_proj feeding column c

    # PyTorch does `keys.view(B,S,Hkv,N,D)` on a buffer whose natural layout is
    # [B,S,N,Hkv*D]; that raw reinterpretation means head h (kv group h//G),
    # slot i, dim d reads flat offset (h//G)*N*D + i*D + d of the natural
    # per-position K buffer:
    cflat = (h_idx // G) * ND + i_idx * D + d_idx
    n_nat = cflat // KVD                          # natural neighbor row
    j_nat = cflat % KVD                           # natural (kvh*D + d) projection output

    wq = params["q_proj"]                         # [H*D, hidden]     (torch [out, in])
    wk = params["k_proj"]                         # [Hkv*D, rH]
    wv = params["v_proj"]                         # [Hkv*D, rH]
    wo = params["o_proj"]                         # [hidden, H*D]
    dt = wq.dtype

    # Q: [hidden, HND]; scaler folded in, replicated across the N neighbor slots.
    wqb = (scaler * jnp.take(wq, qo_row, axis=0)).T

    # K/V: block-"diagonal" over natural neighbors with the .view scramble and
    # repeat_kv folded into the column layout.  [N*rH, 2*HND]
    def expand(w):
        rows = jnp.take(w, j_nat, axis=0)                         # [HND, rH]
        blk = jnp.zeros((N, HND, r_hidden), dtype=dt)
        blk = blk.at[n_nat, c, :].set(rows)                       # [N, HND, rH]
        return jnp.transpose(blk, (0, 2, 1)).reshape(N * r_hidden, HND)

    wkvb = jnp.concatenate([expand(wk), expand(wv)], axis=1)      # [N*rH, 2*HND]

    # Score selector: sums (q*k) over d, laying scores out as col = i*H + h,
    # so the softmax-over-neighbors groups are contiguous H-lane slices.
    sels_np = np.zeros((HND, N * H), dtype=np.float32)
    sels_np[c, i_idx * H + h_idx] = 1.0
    sels = jnp.asarray(sels_np, dtype=dt)                         # [HND, N*H]
    selp = sels.T                                                 # [N*H, HND] broadcast p over d

    # O: folds the sum over neighbor slots into the output projection.
    wob = jnp.take(wo.T, qo_row, axis=0)                          # [HND, hidden]
    return wqb, wkvb, sels, selp, wob


def _cache_attn_kernel(hid_ref, ret_ref, wqb_ref, wkvb_ref, sels_ref, selp_ref,
                       wob_ref, out_ref, *, num_heads, num_neighbors):
    H, N = num_heads, num_neighbors
    HND = wqb_ref.shape[1]

    # Projections (MXU, default precision, f32 accumulation).
    q_big = jnp.dot(hid_ref[...], wqb_ref[...],
                    preferred_element_type=jnp.float32)           # [T, HND]
    kv_big = jnp.dot(ret_ref[...], wkvb_ref[...],
                     preferred_element_type=jnp.float32)          # [T, 2*HND]
    k_big = kv_big[:, :HND]
    v_big = kv_big[:, HND:]

    # Scores: s[:, i*H + h] = sum_d q[t,h,d] * k_view[t, h//G, i, d]
    s = jnp.dot(q_big * k_big, sels_ref[...],
                preferred_element_type=jnp.float32)               # [T, N*H]

    # Softmax over neighbor slots (groups of H consecutive columns).
    cols = [s[:, i * H:(i + 1) * H] for i in range(N)]            # N x [T, H]
    m = functools.reduce(jnp.maximum, cols)
    es = [jnp.exp(ci - m) for ci in cols]
    denom = functools.reduce(lambda a, b: a + b, es)
    inv = pl.reciprocal(denom, approx=True)
    p = jnp.concatenate([e * inv for e in es], axis=-1)           # [T, N*H]

    # Broadcast p over head_dim, weight the values, and project out.  The
    # output projection also performs the sum over neighbor slots.
    p_big = jnp.dot(p, selp_ref[...],
                    preferred_element_type=jnp.float32)           # [T, HND]
    out = jnp.dot(p_big * v_big, wob_ref[...],
                  preferred_element_type=jnp.float32)             # [T, hidden]
    out_ref[...] = out.astype(out_ref.dtype)


def cache_attention_forward(hidden_states, retrieved_hidden_states, params, *,
                            num_heads, num_kv_heads, context_size=1, row_tile=512):
    """JAX/Pallas equivalent of CacheAttention.forward (context_size == 1)."""
    # TODO(synk): context_size > 1 path (repeat_neighbors gather + cached_key_values
    #             concat for generation) is not implemented; context_size == 1 only.
    assert context_size == 1
    B, S, hidden_size = hidden_states.shape
    _, _, N, r_hidden = retrieved_hidden_states.shape
    head_dim = hidden_size // num_heads
    scaler = head_dim ** (-0.5)

    wqb, wkvb, sels, selp, wob = _build_kernel_weights(
        params, num_heads=num_heads, num_kv_heads=num_kv_heads, head_dim=head_dim,
        num_neighbors=N, r_hidden=r_hidden, scaler=scaler)

    rows = B * S
    rt = min(row_tile, _round_up(rows, 8))        # large tile, but never larger than needed
    rows_p = _round_up(rows, rt)

    hid2d = hidden_states.reshape(rows, hidden_size)
    retw = retrieved_hidden_states.reshape(rows, N * r_hidden)
    if rows_p != rows:
        pad = rows_p - rows
        hid2d = jnp.pad(hid2d, ((0, pad), (0, 0)))
        retw = jnp.pad(retw, ((0, pad), (0, 0)))

    kernel = functools.partial(_cache_attn_kernel,
                               num_heads=num_heads, num_neighbors=N)

    # TODO(synk): for hidden_size < 128 the output stores are lane-masked; a packed
    #             [rows/4, 128] output layout would need an in-kernel relayout and is
    #             skipped here (moot for realistic hidden sizes >= 128).
    out2d = pl.pallas_call(
        kernel,
        out_shape=jax.ShapeDtypeStruct((rows_p, hidden_size), hidden_states.dtype),
        grid_spec=pltpu.PrefetchScalarGridSpec(
            num_scalar_prefetch=0,
            grid=(rows_p // rt,),
            in_specs=[
                pl.BlockSpec((rt, hidden_size), lambda i: (i, 0)),
                pl.BlockSpec((rt, N * r_hidden), lambda i: (i, 0)),
                pl.BlockSpec(wqb.shape, lambda i: (0, 0)),
                pl.BlockSpec(wkvb.shape, lambda i: (0, 0)),
                pl.BlockSpec(sels.shape, lambda i: (0, 0)),
                pl.BlockSpec(selp.shape, lambda i: (0, 0)),
                pl.BlockSpec(wob.shape, lambda i: (0, 0)),
            ],
            out_specs=pl.BlockSpec((rt, hidden_size), lambda i: (i, 0)),
        ),
        compiler_params=pltpu.CompilerParams(dimension_semantics=("parallel",)),
    )(hid2d, retw, wqb, wkvb, sels, selp, wob)

    attn_output = out2d[:rows].reshape(B, S, hidden_size)
    cached_key_values = (None, None)   # context_size == 1 branch of the torch module
    return attn_output, cached_key_values


def _reference_forward(hidden_states, retrieved, params, *, num_heads, num_kv_heads):
    """Pure-JAX transcription of the PyTorch forward (context_size == 1)."""
    HIGH = jax.lax.Precision.HIGHEST
    B, S, hidden_size = hidden_states.shape
    _, _, N, _ = retrieved.shape
    D = hidden_size // num_heads
    G = num_heads // num_kv_heads
    scaler = D ** (-0.5)

    q = jnp.einsum("bsh,oh->bso", hidden_states, params["q_proj"], precision=HIGH) * scaler
    q = q.reshape(B, S, num_heads, D)
    k = jnp.einsum("bsnr,or->bsno", retrieved, params["k_proj"], precision=HIGH)
    v = jnp.einsum("bsnr,or->bsno", retrieved, params["v_proj"], precision=HIGH)
    # exact torch `.view(B, S, num_kv_heads, N, head_dim)` semantics (raw reshape):
    k = k.reshape(B, S, num_kv_heads, N, D)
    v = v.reshape(B, S, num_kv_heads, N, D)
    # repeat_kv
    k = jnp.broadcast_to(k[:, :, :, None], (B, S, num_kv_heads, G, N, D)).reshape(B, S, num_heads, N, D)
    v = jnp.broadcast_to(v[:, :, :, None], (B, S, num_kv_heads, G, N, D)).reshape(B, S, num_heads, N, D)
    attn = jnp.einsum("bqhd,bqhid->bhqi", q, k, precision=HIGH)
    attn = jax.nn.softmax(attn, axis=-1)
    o = jnp.einsum("bhqi,bqhid->bqhd", attn, v, precision=HIGH)
    o = o.reshape(B, S, hidden_size)
    return jnp.einsum("bso,ho->bsh", o, params["o_proj"], precision=HIGH)


def _trunc_normal(key, shape, std):
    # matches nn.init.trunc_normal_(mean=0, std=in_features**-0.5) closely enough
    return std * jax.random.truncated_normal(key, -2.0, 2.0, shape, jnp.float32)


if __name__ == "__main__":
    # Small, module-consistent shapes.
    B, S = 2, 8
    hidden_size = 32
    num_heads, num_kv_heads = 4, 2
    head_dim = hidden_size // num_heads            # 8
    compression_factor = 2
    r_hidden = hidden_size // compression_factor   # 16
    num_neighbors = 4

    key = jax.random.PRNGKey(0)
    kq, kk, kv, ko, kh, kr = jax.random.split(key, 6)
    params = {
        "q_proj": _trunc_normal(kq, (num_heads * head_dim, hidden_size), hidden_size ** -0.5),
        "k_proj": _trunc_normal(kk, (num_kv_heads * head_dim, r_hidden), r_hidden ** -0.5),
        "v_proj": _trunc_normal(kv, (num_kv_heads * head_dim, r_hidden), r_hidden ** -0.5),
        "o_proj": _trunc_normal(ko, (hidden_size, num_heads * head_dim), (num_heads * head_dim) ** -0.5),
    }
    hidden_states = jax.random.normal(kh, (B, S, hidden_size), jnp.float32)
    retrieved = jax.random.normal(kr, (B, S, num_neighbors, r_hidden), jnp.float32)

    out, cached = cache_attention_forward(
        hidden_states, retrieved, params,
        num_heads=num_heads, num_kv_heads=num_kv_heads, context_size=1)
    out = jax.block_until_ready(out)

    ref = _reference_forward(hidden_states, retrieved, params,
                             num_heads=num_heads, num_kv_heads=num_kv_heads)
    assert out.shape == (B, S, hidden_size)
    max_err = float(jnp.max(jnp.abs(out - ref)))
    assert max_err < 5e-2, f"mismatch vs reference: max abs err = {max_err}"
    print("KERNEL_OK")
</pallas_src>

<mosaic_0001>
module attributes {stable_mosaic.version = 11 : i64} {
  func.func @_cache_attn_kernel(%arg0: i32, %arg1: memref<16x32xf32, #tpu.memory_space<vmem>>, %arg2: memref<16x64xf32, #tpu.memory_space<vmem>>, %arg3: memref<32x128xf32, #tpu.memory_space<vmem>>, %arg4: memref<64x256xf32, #tpu.memory_space<vmem>>, %arg5: memref<128x16xf32, #tpu.memory_space<vmem>>, %arg6: memref<16x128xf32, #tpu.memory_space<vmem>>, %arg7: memref<128x32xf32, #tpu.memory_space<vmem>>, %arg8: memref<16x32xf32, #tpu.memory_space<vmem>>) attributes {dimension_semantics = [#tpu.dimension_semantics<parallel>], iteration_bounds = array<i64: 1>, scalar_prefetch = 0 : i64, scratch_operands = 0 : i64, tpu.core_type = #tpu.core_type<tc>, window_params = [{transform_indices = @transform_0, window_bounds = array<i64: 16, 32>}, {transform_indices = @transform_1, window_bounds = array<i64: 16, 64>}, {pipeline_mode = #tpu.pipeline_mode<synchronous>, transform_indices = @transform_2, window_bounds = array<i64: 32, 128>}, {pipeline_mode = #tpu.pipeline_mode<synchronous>, transform_indices = @transform_3, window_bounds = array<i64: 64, 256>}, {pipeline_mode = #tpu.pipeline_mode<synchronous>, transform_indices = @transform_4, window_bounds = array<i64: 128, 16>}, {pipeline_mode = #tpu.pipeline_mode<synchronous>, transform_indices = @transform_5, window_bounds = array<i64: 16, 128>}, {pipeline_mode = #tpu.pipeline_mode<synchronous>, transform_indices = @transform_6, window_bounds = array<i64: 128, 32>}, {transform_indices = @transform_7, window_bounds = array<i64: 16, 32>}]} {
    %c0 = arith.constant 0 : index
    %c0_0 = arith.constant 0 : index
    %0 = vector.load %arg1[%c0, %c0_0] : memref<16x32xf32, #tpu.memory_space<vmem>>, vector<16x32xf32>
    %c0_1 = arith.constant 0 : index
    %c0_2 = arith.constant 0 : index
    %1 = vector.load %arg3[%c0_1, %c0_2] : memref<32x128xf32, #tpu.memory_space<vmem>>, vector<32x128xf32>
    %cst = arith.constant dense<0.000000e+00> : vector<16x128xf32>
    %2 = tpu.matmul %0, %1, %cst {dimension_numbers = #tpu.dot_dimension_numbers<[1], [0], [0], [1], [0, 0, 1, 1], [], []>} : vector<16x32xf32>, vector<32x128xf32>, vector<16x128xf32> -> vector<16x128xf32>
    %c0_3 = arith.constant 0 : index
    %c0_4 = arith.constant 0 : index
    %3 = vector.load %arg2[%c0_3, %c0_4] : memref<16x64xf32, #tpu.memory_space<vmem>>, vector<16x64xf32>
    %c0_5 = arith.constant 0 : index
    %c0_6 = arith.constant 0 : index
    %4 = vector.load %arg4[%c0_5, %c0_6] : memref<64x256xf32, #tpu.memory_space<vmem>>, vector<64x256xf32>
    %cst_7 = arith.constant dense<0.000000e+00> : vector<16x256xf32>
    %5 = tpu.matmul %3, %4, %cst_7 {dimension_numbers = #tpu.dot_dimension_numbers<[1], [0], [0], [1], [0, 0, 1, 1], [], []>} : vector<16x64xf32>, vector<64x256xf32>, vector<16x256xf32> -> vector<16x256xf32>
    %6 = vector.extract_strided_slice %5 {offsets = [0, 0], sizes = [16, 128], strides = [1, 1]} : vector<16x256xf32> to vector<16x128xf32>
    %7 = vector.extract_strided_slice %5 {offsets = [0, 128], sizes = [16, 128], strides = [1, 1]} : vector<16x256xf32> to vector<16x128xf32>
    %8 = arith.mulf %2, %6 : vector<16x128xf32>
    %c0_8 = arith.constant 0 : index
    %c0_9 = arith.constant 0 : index
    %9 = vector.load %arg5[%c0_8, %c0_9] : memref<128x16xf32, #tpu.memory_space<vmem>>, vector<128x16xf32>
    %cst_10 = arith.constant dense<0.000000e+00> : vector<16x16xf32>
    %10 = tpu.matmul %8, %9, %cst_10 {dimension_numbers = #tpu.dot_dimension_numbers<[1], [0], [0], [1], [0, 0, 1, 1], [], []>} : vector<16x128xf32>, vector<128x16xf32>, vector<16x16xf32> -> vector<16x16xf32>
    %11 = vector.extract_strided_slice %10 {offsets = [0, 0], sizes = [16, 4], strides = [1, 1]} : vector<16x16xf32> to vector<16x4xf32>
    %12 = vector.extract_strided_slice %10 {offsets = [0, 4], sizes = [16, 4], strides = [1, 1]} : vector<16x16xf32> to vector<16x4xf32>
    %13 = vector.extract_strided_slice %10 {offsets = [0, 8], sizes = [16, 4], strides = [1, 1]} : vector<16x16xf32> to vector<16x4xf32>
    %14 = vector.extract_strided_slice %10 {offsets = [0, 12], sizes = [16, 4], strides = [1, 1]} : vector<16x16xf32> to vector<16x4xf32>
    %15 = arith.maximumf %11, %12 : vector<16x4xf32>
    %16 = arith.maximumf %15, %13 : vector<16x4xf32>
    %17 = arith.maximumf %16, %14 : vector<16x4xf32>
    %18 = arith.subf %11, %17 : vector<16x4xf32>
    %19 = math.exp %18 : vector<16x4xf32>
    %20 = arith.subf %12, %17 : vector<16x4xf32>
    %21 = math.exp %20 : vector<16x4xf32>
    %22 = arith.subf %13, %17 : vector<16x4xf32>
    %23 = math.exp %22 : vector<16x4xf32>
    %24 = arith.subf %14, %17 : vector<16x4xf32>
    %25 = math.exp %24 : vector<16x4xf32>
    %26 = arith.addf %19, %21 : vector<16x4xf32>
    %27 = arith.addf %26, %23 : vector<16x4xf32>
    %28 = arith.addf %27, %25 : vector<16x4xf32>
    %29 = tpu.reciprocal %28 {approx = true} : vector<16x4xf32> -> vector<16x4xf32>
    %30 = arith.mulf %19, %29 : vector<16x4xf32>
    %31 = arith.mulf %21, %29 : vector<16x4xf32>
    %32 = arith.mulf %23, %29 : vector<16x4xf32>
    %33 = arith.mulf %25, %29 : vector<16x4xf32>
    %34 = tpu.concatenate %30, %31, %32, %33 in 1 : vector<16x4xf32>, vector<16x4xf32>, vector<16x4xf32>, vector<16x4xf32> -> vector<16x16xf32>
    %c0_11 = arith.constant 0 : index
    %c0_12 = arith.constant 0 : index
    %35 = vector.load %arg6[%c0_11, %c0_12] : memref<16x128xf32, #tpu.memory_space<vmem>>, vector<16x128xf32>
    %cst_13 = arith.constant dense<0.000000e+00> : vector<16x128xf32>
    %36 = tpu.matmul %34, %35, %cst_13 {dimension_numbers = #tpu.dot_dimension_numbers<[1], [0], [0], [1], [0, 0, 1, 1], [], []>} : vector<16x16xf32>, vector<16x128xf32>, vector<16x128xf32> -> vector<16x128xf32>
    %37 = arith.mulf %36, %7 : vector<16x128xf32>
    %c0_14 = arith.constant 0 : index
    %c0_15 = arith.constant 0 : index
    %38 = vector.load %arg7[%c0_14, %c0_15] : memref<128x32xf32, #tpu.memory_space<vmem>>, vector<128x32xf32>
    %cst_16 = arith.constant dense<0.000000e+00> : vector<16x32xf32>
    %39 = tpu.matmul %37, %38, %cst_16 {dimension_numbers = #tpu.dot_dimension_numbers<[1], [0], [0], [1], [0, 0, 1, 1], [], []>} : vector<16x128xf32>, vector<128x32xf32>, vector<16x32xf32> -> vector<16x32xf32>
    %c0_17 = arith.constant 0 : index
    %c0_18 = arith.constant 0 : index
    %40 = vector.load %arg8[%c0_17, %c0_18] : memref<16x32xf32, #tpu.memory_space<vmem>>, vector<16x32xf32>
    tpu.vector_store %arg8[%c0_17, %c0_18], %39 {strides = array<i32>} : memref<16x32xf32, #tpu.memory_space<vmem>>, vector<16x32xf32>,
    return
  }
  func.func @transform_0(%arg0: i32) -> (i32, i32) {
    %c0_i32 = arith.constant 0 : i32
    %c0_i32_0 = arith.constant 0 : i32
    return %arg0, %c0_i32 : i32, i32
  }
  func.func @transform_1(%arg0: i32) -> (i32, i32) {
    %c0_i32 = arith.constant 0 : i32
    %c0_i32_0 = arith.constant 0 : i32
    return %arg0, %c0_i32 : i32, i32
  }
  func.func @transform_2(%arg0: i32) -> (i32, i32) {
    %c0_i32 = arith.constant 0 : i32
    %c0_i32_0 = arith.constant 0 : i32
    %c0_i32_1 = arith.constant 0 : i32
    return %c0_i32, %c0_i32_0 : i32, i32
  }
  func.func @transform_3(%arg0: i32) -> (i32, i32) {
    %c0_i32 = arith.constant 0 : i32
    %c0_i32_0 = arith.constant 0 : i32
    %c0_i32_1 = arith.constant 0 : i32
    return %c0_i32, %c0_i32_0 : i32, i32
  }
  func.func @transform_4(%arg0: i32) -> (i32, i32) {
    %c0_i32 = arith.constant 0 : i32
    %c0_i32_0 = arith.constant 0 : i32
    %c0_i32_1 = arith.constant 0 : i32
    return %c0_i32, %c0_i32_0 : i32, i32
  }
  func.func @transform_5(%arg0: i32) -> (i32, i32) {
    %c0_i32 = arith.constant 0 : i32
    %c0_i32_0 = arith.constant 0 : i32
    %c0_i32_1 = arith.constant 0 : i32
    return %c0_i32, %c0_i32_0 : i32, i32
  }
  func.func @transform_6(%arg0: i32) -> (i32, i32) {
    %c0_i32 = arith.constant 0 : i32
    %c0_i32_0 = arith.constant 0 : i32
    %c0_i32_1 = arith.constant 0 : i32
    return %c0_i32, %c0_i32_0 : i32, i32
  }
  func.func @transform_7(%arg0: i32) -> (i32, i32) {
    %c0_i32 = arith.constant 0 : i32
    %c0_i32_0 = arith.constant 0 : i32
    return %arg0, %c0_i32 : i32, i32
  }
}

</mosaic_0001>

<llo_original>
// kernel: tpu_custom_call.1
$region0: #{tpu_custom_call.1}
  #allocation0 [shape = 'u32[]', space=smem, size = 0x4, offset = 0x4, fixed_abs, tag = 'smem constant byte address 0x4 - core index']
  #allocation1 [shape = 'u32[144,128]{1,0:T(1,128)}', space=vmem, size = 0x12000, scoped, tag = 'internal scratch']
  %s0 = inlined_call_operand.vmem [shape: f32[16,32], index: 0, kind: input, shape index: {}]
  %s1 = inlined_call_operand.vmem [shape: f32[16,64], index: 1, kind: input, shape index: {}]
  %s2 = inlined_call_operand.vmem [shape: f32[32,128], index: 2, kind: input, shape index: {}]
  %s3 = inlined_call_operand.vmem [shape: f32[64,256], index: 3, kind: input, shape index: {}]
  %s4 = inlined_call_operand.vmem [shape: f32[128,16], index: 4, kind: input, shape index: {}]
  %s5 = inlined_call_operand.vmem [shape: f32[16,128], index: 5, kind: input, shape index: {}]
  %s6 = inlined_call_operand.vmem [shape: f32[128,32], index: 6, kind: input, shape index: {}]
  %s7 = inlined_call_operand.hbm [shape: f32[16,32], index: 7, kind: output, shape index: {}]
  %s8 = sld [smem:[#allocation0]]
  $region38: #{tpu_custom_call.1} parent=0
    _
  %s10 = ssub.s32 1, %s8
  %s11 = scalar_select 0, %s10, %s8
  $region1: #{tpu_custom_call.1} parent=0
    #allocation2 [shape = 'u8[8192]{0}', space=vmem, size = 0x2000, scoped, tag = 'output window, operand 0, single buffered']
    #allocation3 [shape = 's32[1]{0}', space=sflag, size = 0x4, scoped, tag = 'scoped memory for tpu_custom_call.1']
    %12 = vsyncpa [#allocation3], 0
    // Predicated region
    $region2: #{tpu_custom_call.1} parent=1 // pred_check
      _
    $region3: #{tpu_custom_call.1} parent=1 // pred_check_branch
      %14 = sbr.rel (0) target = $region5
    $region4: #{tpu_custom_call.1} parent=1 // pred_region
      _
    $region5: #{tpu_custom_call.1} parent=1 // pred_fallthru
      _
    // Predicated region
    $region6: #{tpu_custom_call.1} parent=1 // pred_check
      _
    $region7: #{tpu_custom_call.1} parent=1 // pred_check_branch
      %16 = sbr.rel (0) target = $region9
    $region8: #{tpu_custom_call.1} parent=1 // pred_region
      _
    $region9: #{tpu_custom_call.1} parent=1 // pred_fallthru
      _
    // Predicated region
    $region10: #{tpu_custom_call.1} parent=1 // pred_check
      _
    $region11: #{tpu_custom_call.1} parent=1 // pred_check_branch
      %18 = sbr.rel (0) target = $region13
    $region12: #{tpu_custom_call.1} parent=1 // pred_region
      _
    $region13: #{tpu_custom_call.1} parent=1 // pred_fallthru
      _
    // Predicated region
    $region14: #{tpu_custom_call.1} parent=1 // pred_check
      _
    $region15: #{tpu_custom_call.1} parent=1 // pred_check_branch
      %20 = sbr.rel (0) target = $region17
    $region16: #{tpu_custom_call.1} parent=1 // pred_region
      _
    $region17: #{tpu_custom_call.1} parent=1 // pred_fallthru
      _
    // Predicated region
    $region18: #{tpu_custom_call.1} parent=1 // pred_check
      _
    $region19: #{tpu_custom_call.1} parent=1 // pred_check_branch
      %22 = sbr.rel (0) target = $region21
    $region20: #{tpu_custom_call.1} parent=1 // pred_region
      _
    $region21: #{tpu_custom_call.1} parent=1 // pred_fallthru
      _
    // Predicated region
    $region22: #{tpu_custom_call.1} parent=1 // pred_check
      _
    $region23: #{tpu_custom_call.1} parent=1 // pred_check_branch
      %24 = sbr.rel (0) target = $region25
    $region24: #{tpu_custom_call.1} parent=1 // pred_region
      _
    $region25: #{tpu_custom_call.1} parent=1 // pred_fallthru
      _
    // Predicated region
    $region26: #{tpu_custom_call.1} parent=1 // pred_check
      _
    $region27: #{tpu_custom_call.1} parent=1 // pred_check_branch
      %26 = sbr.rel (0) target = $region29
    $region28: #{tpu_custom_call.1} parent=1 // pred_region
      _
    $region29: #{tpu_custom_call.1} parent=1 // pred_fallthru
      _
    %v27 = vld [vmem:[%s0] sm:$0xff]
    %v28 = vld [vmem:[%s0 + $0x8] sm:$0xff]
    %v29 = vld [vmem:[%s2] sm:$0xff]
    %v30 = vld [vmem:[%s2 + $0x8] sm:$0xff]
    %v31 = vld [vmem:[%s2 + $0x10] sm:$0xff]
    %v32 = vld [vmem:[%s2 + $0x18] sm:$0xff]
    %vm33 = vcmask 261120
    %v35 = vsel %vm33, %v27, 0
    %v38 = vsel %vm33, %v28, 0
    %40 = vmatprep.subr.mxu0 0.0
    %41 = vmatpush1.msra.mxu0 0.0
    %42 = vmatprep.subr.mxu0 0.0
    %43 = vmatpush1.msra.mxu0 0.0
    %44 = vmatprep.subr.mxu0 0.0
    %45 = vmatpush1.msra.mxu0 0.0
    %46 = vmatprep.subr.mxu0 0.0
    %47 = vmatpush1.msra.mxu0 0.0
    %48 = vmatprep.subr.mxu0 0.0
    %49 = vmatpush1.msra.mxu0 0.0
    %50 = vmatprep.subr.mxu0 0.0
    %51 = vmatpush1.msra.mxu0 0.0
    %52 = vmatprep.subr.mxu0 0.0
    %53 = vmatpush1.msra.mxu0 0.0
    %54 = vmatprep.subr.mxu0 0.0
    %55 = vmatpush1.msra.mxu0 0.0
    %56 = vmatprep.subr.mxu0 0.0
    %57 = vmatpush1.msra.mxu0 0.0
    %58 = vmatprep.subr.mxu0 0.0
    %59 = vmatpush1.msra.mxu0 0.0
    %60 = vmatprep.subr.mxu0 0.0
    %61 = vmatpush1.msra.mxu0 0.0
    %62 = vmatprep.subr.mxu0 0.0
    %63 = vmatpush1.msra.mxu0 0.0
    %64 = vmatprep.subr.mxu0 0.0
    %65 = vmatpush1.msra.mxu0 %v32
    %66 = vmatprep.subr.mxu0 0.0
    %67 = vmatpush1.msra.mxu0 %v31
    %68 = vmatprep.subr.mxu0 0.0
    %69 = vmatpush1.msra.mxu0 %v30
    %70 = vmatprep.subr.mxu0 0.0
    %71 = vmatpush1.msra.mxu0 %v29
    %72 = vmatprep.subr.mxu0 0.0
    %73 = vmatpush2.msra.mxu0 0.0
    %74 = vmatprep.subr.mxu0 0.0
    %75 = vmatpush2.msra.mxu0 0.0
    %76 = vmatprep.subr.mxu0 0.0
    %77 = vmatpush2.msra.mxu0 0.0
    %78 = vmatprep.subr.mxu0 0.0
    %79 = vmatpush2.msra.mxu0 0.0
    %80 = vmatprep.subr.mxu0 0.0
    %81 = vmatpush2.msra.mxu0 0.0
    %82 = vmatprep.subr.mxu0 0.0
    %83 = vmatpush2.msra.mxu0 0.0
    %84 = vmatprep.subr.mxu0 0.0
    %85 = vmatpush2.msra.mxu0 0.0
    %86 = vmatprep.subr.mxu0 0.0
    %87 = vmatpush2.msra.mxu0 0.0
    %88 = vmatprep.subr.mxu0 0.0
    %89 = vmatpush2.msra.mxu0 0.0
    %90 = vmatprep.subr.mxu0 0.0
    %91 = vmatpush2.msra.mxu0 0.0
    %92 = vmatprep.subr.mxu0 0.0
    %93 = vmatpush2.msra.mxu0 0.0
    %94 = vmatprep.subr.mxu0 0.0
    %95 = vmatpush2.msra.mxu0 0.0
    %96 = vmatprep.subr.mxu0 0.0
    %97 = vmatpush2.msra.mxu0 0.0
    %98 = vmatprep.subr.mxu0 0.0
    %99 = vmatpush2.msra.mxu0 0.0
    %100 = vmatprep.subr.mxu0 0.0
    %101 = vmatpush2.msra.mxu0 0.0
    %102 = vmatprep.subr.mxu0 0.0
    %103 = vmatpush2.msra.mxu0 0.0
    %104 = vmatprep.mubr.f32.mxu0 0.0
    %105 = vmatmul.mubr.f32.gmra.mxu0 %v35
    %v106 = vpop.f32.mrf.mxu0
    %v107 = vadd.f32 0.0, %v106
    %v108 = vpop.f32.mrf.mxu0
    %109 = vmatprep.mubr.f32.mxu0 0.0
    %110 = vmatmul.mubr.f32.gmra.mxu0 %v38
    %v111 = vpop.f32.mrf.mxu0
    %v112 = vadd.f32 0.0, %v111
    %v113 = vpop.f32.mrf.mxu0
    %114 = vdwg.mxu0
    %v115 = vld [vmem:[%s1] sm:$0xff]
    %v116 = vld [vmem:[%s1 + $0x8] sm:$0xff]
    %v117 = vld [vmem:[%s3] sm:$0xff]
    %v118 = vld [vmem:[%s3 + $0x8] sm:$0xff]
    %v119 = vld [vmem:[%s3 + $0x10] sm:$0xff]
    %v120 = vld [vmem:[%s3 + $0x18] sm:$0xff]
    %v121 = vld [vmem:[%s3 + $0x20] sm:$0xff]
    %v122 = vld [vmem:[%s3 + $0x28] sm:$0xff]
    %v123 = vld [vmem:[%s3 + $0x30] sm:$0xff]
    %v124 = vld [vmem:[%s3 + $0x38] sm:$0xff]
    %v125 = vld [vmem:[%s3 + $0x40] sm:$0xff]
    %v126 = vld [vmem:[%s3 + $0x48] sm:$0xff]
    %v127 = vld [vmem:[%s3 + $0x50] sm:$0xff]
    %v128 = vld [vmem:[%s3 + $0x58] sm:$0xff]
    %v129 = vld [vmem:[%s3 + $0x60] sm:$0xff]
    %v130 = vld [vmem:[%s3 + $0x68] sm:$0xff]
    %v131 = vld [vmem:[%s3 + $0x70] sm:$0xff]
    %v132 = vld [vmem:[%s3 + $0x78] sm:$0xff]
    %vm133 = vcmask 523264
    %v135 = vsel %vm133, %v115, 0
    %v138 = vsel %vm133, %v116, 0
    %140 = vmatprep.subr.mxu0 0.0
    %141 = vmatpush1.msra.mxu0 0.0
    %142 = vmatprep.subr.mxu0 0.0
    %143 = vmatpush1.msra.mxu0 0.0
    %144 = vmatprep.subr.mxu0 0.0
    %145 = vmatpush1.msra.mxu0 0.0
    %146 = vmatprep.subr.mxu0 0.0
    %147 = vmatpush1.msra.mxu0 0.0
    %148 = vmatprep.subr.mxu0 0.0
    %149 = vmatpush1.msra.mxu0 0.0
    %150 = vmatprep.subr.mxu0 0.0
    %151 = vmatpush1.msra.mxu0 0.0
    %152 = vmatprep.subr.mxu0 0.0
    %153 = vmatpush1.msra.mxu0 0.0
    %154 = vmatprep.subr.mxu0 0.0
    %155 = vmatpush1.msra.mxu0 0.0
    %156 = vmatprep.subr.mxu0 %v132
    %157 = vmatpush1.msra.mxu0 %v131
    %158 = vmatprep.subr.mxu0 %v130
    %159 = vmatpush1.msra.mxu0 %v129
    %160 = vmatprep.subr.mxu0 %v128
    %161 = vmatpush1.msra.mxu0 %v127
    %162 = vmatprep.subr.mxu0 %v126
    %163 = vmatpush1.msra.mxu0 %v125
    %164 = vmatprep.subr.mxu0 %v124
    %165 = vmatpush1.msra.mxu0 %v123
    %166 = vmatprep.subr.mxu0 %v122
    %167 = vmatpush1.msra.mxu0 %v121
    %168 = vmatprep.subr.mxu0 %v120
    %169 = vmatpush1.msra.mxu0 %v119
    %170 = vmatprep.subr.mxu0 %v118
    %171 = vmatpush1.msra.mxu0 %v117
    %172 = vmatprep.subr.mxu0 0.0
    %173 = vmatpush2.msra.mxu0 0.0
    %174 = vmatprep.subr.mxu0 0.0
    %175 = vmatpush2.msra.mxu0 0.0
    %176 = vmatprep.subr.mxu0 0.0
    %177 = vmatpush2.msra.mxu0 0.0
    %178 = vmatprep.subr.mxu0 0.0
    %179 = vmatpush2.msra.mxu0 0.0
    %180 = vmatprep.subr.mxu0 0.0
    %181 = vmatpush2.msra.mxu0 0.0
    %182 = vmatprep.subr.mxu0 0.0
    %183 = vmatpush2.msra.mxu0 0.0
    %184 = vmatprep.subr.mxu0 0.0
    %185 = vmatpush2.msra.mxu0 0.0
    %186 = vmatprep.subr.mxu0 0.0
    %187 = vmatpush2.msra.mxu0 0.0
    %188 = vmatprep.subr.mxu0 0.0
    %189 = vmatpush2.msra.mxu0 0.0
    %190 = vmatprep.subr.mxu0 0.0
    %191 = vmatpush2.msra.mxu0 0.0
    %192 = vmatprep.subr.mxu0 0.0
    %193 = vmatpush2.msra.mxu0 0.0
    %194 = vmatprep.subr.mxu0 0.0
    %195 = vmatpush2.msra.mxu0 0.0
    %196 = vmatprep.subr.mxu0 0.0
    %197 = vmatpush2.msra.mxu0 0.0
    %198 = vmatprep.subr.mxu0 0.0
    %199 = vmatpush2.msra.mxu0 0.0
    %200 = vmatprep.subr.mxu0 0.0
    %201 = vmatpush2.msra.mxu0 0.0
    %202 = vmatprep.subr.mxu0 0.0
    %203 = vmatpush2.msra.mxu0 0.0
    %204 = vmatprep.mubr.f32.mxu0 0.0
    %205 = vmatmul.mubr.f32.gmra.mxu0 %v135
    %v206 = vpop.f32.mrf.mxu0
    %v207 = vadd.f32 0.0, %v206
    %v208 = vpop.f32.mrf.mxu0
    %v209 = vadd.f32 0.0, %v208
    %210 = vmatprep.mubr.f32.mxu0 0.0
    %211 = vmatmul.mubr.f32.gmra.mxu0 %v138
    %v212 = vpop.f32.mrf.mxu0
    %v213 = vadd.f32 0.0, %v212
    %v214 = vpop.f32.mrf.mxu0
    %v215 = vadd.f32 0.0, %v214
    %216 = vdwg.mxu0
    %v217 = vmul.f32 %v107, %v207
    %v218 = vmul.f32 %v112, %v213
    %v219 = vld [vmem:[%s4] sm:$0xff]
    %v220 = vld [vmem:[%s4 + $0x8] sm:$0xff]
    %v221 = vld [vmem:[%s4 + $0x10] sm:$0xff]
    %v222 = vld [vmem:[%s4 + $0x18] sm:$0xff]
    %v223 = vld [vmem:[%s4 + $0x20] sm:$0xff]
    %v224 = vld [vmem:[%s4 + $0x28] sm:$0xff]
    %v225 = vld [vmem:[%s4 + $0x30] sm:$0xff]
    %v226 = vld [vmem:[%s4 + $0x38] sm:$0xff]
    %v227 = vld [vmem:[%s4 + $0x40] sm:$0xff]
    %v228 = vld [vmem:[%s4 + $0x48] sm:$0xff]
    %v229 = vld [vmem:[%s4 + $0x50] sm:$0xff]
    %v230 = vld [vmem:[%s4 + $0x58] sm:$0xff]
    %v231 = vld [vmem:[%s4 + $0x60] sm:$0xff]
    %v232 = vld [vmem:[%s4 + $0x68] sm:$0xff]
    %v233 = vld [vmem:[%s4 + $0x70] sm:$0xff]
    %v234 = vld [vmem:[%s4 + $0x78] sm:$0xff]
    %235 = vmatprep.subr.mxu0 0.0
    %236 = vmatpush1.msra.mxu0 %v234
    %237 = vmatprep.subr.mxu0 0.0
    %238 = vmatpush1.msra.mxu0 %v233
    %239 = vmatprep.subr.mxu0 0.0
    %240 = vmatpush1.msra.mxu0 %v232
    %241 = vmatprep.subr.mxu0 0.0
    %242 = vmatpush1.msra.mxu0 %v231
    %243 = vmatprep.subr.mxu0 0.0
    %244 = vmatpush1.msra.mxu0 %v230
    %245 = vmatprep.subr.mxu0 0.0
    %246 = vmatpush1.msra.mxu0 %v229
    %247 = vmatprep.subr.mxu0 0.0
    %248 = vmatpush1.msra.mxu0 %v228
    %249 = vmatprep.subr.mxu0 0.0
    %250 = vmatpush1.msra.mxu0 %v227
    %251 = vmatprep.subr.mxu0 0.0
    %252 = vmatpush1.msra.mxu0 %v226
    %253 = vmatprep.subr.mxu0 0.0
    %254 = vmatpush1.msra.mxu0 %v225
    %255 = vmatprep.subr.mxu0 0.0
    %256 = vmatpush1.msra.mxu0 %v224
    %257 = vmatprep.subr.mxu0 0.0
    %258 = vmatpush1.msra.mxu0 %v223
    %259 = vmatprep.subr.mxu0 0.0
    %260 = vmatpush1.msra.mxu0 %v222
    %261 = vmatprep.subr.mxu0 0.0
    %262 = vmatpush1.msra.mxu0 %v221
    %263 = vmatprep.subr.mxu0 0.0
    %264 = vmatpush1.msra.mxu0 %v220
    %265 = vmatprep.subr.mxu0 0.0
    %266 = vmatpush1.msra.mxu0 %v219
    %267 = vmatprep.subr.mxu0 0.0
    %268 = vmatpush2.msra.mxu0 0.0
    %269 = vmatprep.subr.mxu0 0.0
    %270 = vmatpush2.msra.mxu0 0.0
    %271 = vmatprep.subr.mxu0 0.0
    %272 = vmatpush2.msra.mxu0 0.0
    %273 = vmatprep.subr.mxu0 0.0
    %274 = vmatpush2.msra.mxu0 0.0
    %275 = vmatprep.subr.mxu0 0.0
    %276 = vmatpush2.msra.mxu0 0.0
    %277 = vmatprep.subr.mxu0 0.0
    %278 = vmatpush2.msra.mxu0 0.0
    %279 = vmatprep.subr.mxu0 0.0
    %280 = vmatpush2.msra.mxu0 0.0
    %281 = vmatprep.subr.mxu0 0.0
    %282 = vmatpush2.msra.mxu0 0.0
    %283 = vmatprep.subr.mxu0 0.0
    %284 = vmatpush2.msra.mxu0 0.0
    %285 = vmatprep.subr.mxu0 0.0
    %286 = vmatpush2.msra.mxu0 0.0
    %287 = vmatprep.subr.mxu0 0.0
    %288 = vmatpush2.msra.mxu0 0.0
    %289 = vmatprep.subr.mxu0 0.0
    %290 = vmatpush2.msra.mxu0 0.0
    %291 = vmatprep.subr.mxu0 0.0
    %292 = vmatpush2.msra.mxu0 0.0
    %293 = vmatprep.subr.mxu0 0.0
    %294 = vmatpush2.msra.mxu0 0.0
    %295 = vmatprep.subr.mxu0 0.0
    %296 = vmatpush2.msra.mxu0 0.0
    %297 = vmatprep.subr.mxu0 0.0
    %298 = vmatpush2.msra.mxu0 0.0
    %299 = vmatprep.mubr.f32.mxu0 0.0
    %300 = vmatmul.mubr.f32.gmra.mxu0 %v217
    %v301 = vpop.f32.mrf.mxu0
    %v302 = vadd.f32 0.0, %v301
    %v303 = vpop.f32.mrf.mxu0
    %304 = vmatprep.mubr.f32.mxu0 0.0
    %305 = vmatmul.mubr.f32.gmra.mxu0 %v218
    %v306 = vpop.f32.mrf.mxu0
    %v307 = vadd.f32 0.0, %v306
    %v308 = vpop.f32.mrf.mxu0
    %309 = vdwg.mxu0
    %312 = vrot.lane.b32.xlu0 %v302, 124
    %v313 = vpop.permute.xlu0 %312
    %314 = vrot.lane.b32.xlu0 %v307, 124
    %v315 = vpop.permute.xlu0 %314
    %v318 = vmax.f32 %v302, %v313
    %v319 = vmax.f32 %v307, %v315
    %320 = vrot.lane.b32.xlu0 %v302, 120
    %v321 = vpop.permute.xlu0 %320
    %322 = vrot.lane.b32.xlu0 %v307, 120
    %v323 = vpop.permute.xlu0 %322
    %v326 = vmax.f32 %v318, %v321
    %v327 = vmax.f32 %v319, %v323
    %328 = vrot.lane.b32.xlu0 %v302, 116
    %v329 = vpop.permute.xlu0 %328
    %330 = vrot.lane.b32.xlu0 %v307, 116
    %v331 = vpop.permute.xlu0 %330
    %v334 = vmax.f32 %v326, %v329
    %v335 = vmax.f32 %v327, %v331
    %v336 = vsub.f32 %v302, %v334
    %v337 = vsub.f32 %v307, %v335
    %v338 = vmul.f32 %v336, 1.442695
    %v339 = vpow.pop %v338
    %v340 = vmul.f32 %v337, 1.442695
    %v341 = vpow.pop %v340
    %344 = vrot.lane.b32.xlu0 %v334, 4
    %v345 = vpop.permute.xlu0 %344
    %346 = vrot.lane.b32.xlu0 %v335, 4
    %v347 = vpop.permute.xlu0 %346
    %v350 = vsub.f32 %v302, %v345
    %v351 = vsub.f32 %v307, %v347
    %v352 = vmul.f32 %v350, 1.442695
    %v353 = vpow.pop %v352
    %v354 = vmul.f32 %v351, 1.442695
    %v355 = vpow.pop %v354
    %356 = vrot.lane.b32.xlu0 %v334, 8
    %v357 = vpop.permute.xlu0 %356
    %358 = vrot.lane.b32.xlu0 %v335, 8
    %v359 = vpop.permute.xlu0 %358
    %v362 = vsub.f32 %v302, %v357
    %v363 = vsub.f32 %v307, %v359
    %v364 = vmul.f32 %v362, 1.442695
    %v365 = vpow.pop %v364
    %v366 = vmul.f32 %v363, 1.442695
    %v367 = vpow.pop %v366
    %368 = vrot.lane.b32.xlu0 %v334, 12
    %v369 = vpop.permute.xlu0 %368
    %370 = vrot.lane.b32.xlu0 %v335, 12
    %v371 = vpop.permute.xlu0 %370
    %v374 = vsub.f32 %v302, %v369
    %v375 = vsub.f32 %v307, %v371
    %v376 = vmul.f32 %v374, 1.442695
    %v377 = vpow.pop %v376
    %v378 = vmul.f32 %v375, 1.442695
    %v379 = vpow.pop %v378
    %382 = vrot.lane.b32.xlu0 %v353, 124
    %v383 = vpop.permute.xlu0 %382
    %384 = vrot.lane.b32.xlu0 %v355, 124
    %v385 = vpop.permute.xlu0 %384
    %v388 = vadd.f32 %v339, %v383
    %v389 = vadd.f32 %v341, %v385
    %392 = vrot.lane.b32.xlu0 %v365, 120
    %v393 = vpop.permute.xlu0 %392
    %394 = vrot.lane.b32.xlu0 %v367, 120
    %v395 = vpop.permute.xlu0 %394
    %v398 = vadd.f32 %v388, %v393
    %v399 = vadd.f32 %v389, %v395
    %402 = vrot.lane.b32.xlu0 %v377, 116
    %v403 = vpop.permute.xlu0 %402
    %404 = vrot.lane.b32.xlu0 %v379, 116
    %v405 = vpop.permute.xlu0 %404
    %v408 = vadd.f32 %v398, %v403
    %v409 = vadd.f32 %v399, %v405
    %v410 = vrcp.pop %v408
    %v411 = vrcp.pop %v409
    %v412 = vmul.f32 %v339, %v410
    %v413 = vmul.f32 %v341, %v411
    %416 = vrot.lane.b32.xlu0 %v410, 4
    %v417 = vpop.permute.xlu0 %416
    %418 = vrot.lane.b32.xlu0 %v411, 4
    %v419 = vpop.permute.xlu0 %418
    %v422 = vmul.f32 %v353, %v417
    %v423 = vmul.f32 %v355, %v419
    %424 = vrot.lane.b32.xlu0 %v410, 8
    %v425 = vpop.permute.xlu0 %424
    %426 = vrot.lane.b32.xlu0 %v411, 8
    %v427 = vpop.permute.xlu0 %426
    %v430 = vmul.f32 %v365, %v425
    %v431 = vmul.f32 %v367, %v427
    %432 = vrot.lane.b32.xlu0 %v410, 12
    %v433 = vpop.permute.xlu0 %432
    %434 = vrot.lane.b32.xlu0 %v411, 12
    %v435 = vpop.permute.xlu0 %434
    %v438 = vmul.f32 %v377, %v433
    %v439 = vmul.f32 %v379, %v435
    %vm440 = vcmask 31744
    %v441 = vsel %vm440, %v412, %v422
    %v442 = vsel %vm440, %v413, %v423
    %vm443 = vcmask 64512
    %v444 = vsel %vm443, %v441, %v430
    %v445 = vsel %vm443, %v442, %v431
    %vm446 = vcmask 97280
    %v447 = vsel %vm446, %v444, %v438
    %v448 = vsel %vm446, %v445, %v439
    %v449 = vld [vmem:[%s5] sm:$0xff]
    %v450 = vld [vmem:[%s5 + $0x8] sm:$0xff]
    %vm451 = vcmask 130048
    %v453 = vsel %vm451, %v447, 0
    %v456 = vsel %vm451, %v448, 0
    %458 = vmatprep.subr.mxu0 0.0
    %459 = vmatpush1.msra.mxu0 0.0
    %460 = vmatprep.subr.mxu0 0.0
    %461 = vmatpush1.msra.mxu0 0.0
    %462 = vmatprep.subr.mxu0 0.0
    %463 = vmatpush1.msra.mxu0 0.0
    %464 = vmatprep.subr.mxu0 0.0
    %465 = vmatpush1.msra.mxu0 0.0
    %466 = vmatprep.subr.mxu0 0.0
    %467 = vmatpush1.msra.mxu0 0.0
    %468 = vmatprep.subr.mxu0 0.0
    %469 = vmatpush1.msra.mxu0 0.0
    %470 = vmatprep.subr.mxu0 0.0
    %471 = vmatpush1.msra.mxu0 0.0
    %472 = vmatprep.subr.mxu0 0.0
    %473 = vmatpush1.msra.mxu0 0.0
    %474 = vmatprep.subr.mxu0 0.0
    %475 = vmatpush1.msra.mxu0 0.0
    %476 = vmatprep.subr.mxu0 0.0
    %477 = vmatpush1.msra.mxu0 0.0
    %478 = vmatprep.subr.mxu0 0.0
    %479 = vmatpush1.msra.mxu0 0.0
    %480 = vmatprep.subr.mxu0 0.0
    %481 = vmatpush1.msra.mxu0 0.0
    %482 = vmatprep.subr.mxu0 0.0
    %483 = vmatpush1.msra.mxu0 0.0
    %484 = vmatprep.subr.mxu0 0.0
    %485 = vmatpush1.msra.mxu0 0.0
    %486 = vmatprep.subr.mxu0 0.0
    %487 = vmatpush1.msra.mxu0 %v450
    %488 = vmatprep.subr.mxu0 0.0
    %489 = vmatpush1.msra.mxu0 %v449
    %490 = vmatprep.subr.mxu0 0.0
    %491 = vmatpush2.msra.mxu0 0.0
    %492 = vmatprep.subr.mxu0 0.0
    %493 = vmatpush2.msra.mxu0 0.0
    %494 = vmatprep.subr.mxu0 0.0
    %495 = vmatpush2.msra.mxu0 0.0
    %496 = vmatprep.subr.mxu0 0.0
    %497 = vmatpush2.msra.mxu0 0.0
    %498 = vmatprep.subr.mxu0 0.0
    %499 = vmatpush2.msra.mxu0 0.0
    %500 = vmatprep.subr.mxu0 0.0
    %501 = vmatpush2.msra.mxu0 0.0
    %502 = vmatprep.subr.mxu0 0.0
    %503 = vmatpush2.msra.mxu0 0.0
    %504 = vmatprep.subr.mxu0 0.0
    %505 = vmatpush2.msra.mxu0 0.0
    %506 = vmatprep.subr.mxu0 0.0
    %507 = vmatpush2.msra.mxu0 0.0
    %508 = vmatprep.subr.mxu0 0.0
    %509 = vmatpush2.msra.mxu0 0.0
    %510 = vmatprep.subr.mxu0 0.0
    %511 = vmatpush2.msra.mxu0 0.0
    %512 = vmatprep.subr.mxu0 0.0
    %513 = vmatpush2.msra.mxu0 0.0
    %514 = vmatprep.subr.mxu0 0.0
    %515 = vmatpush2.msra.mxu0 0.0
    %516 = vmatprep.subr.mxu0 0.0
    %517 = vmatpush2.msra.mxu0 0.0
    %518 = vmatprep.subr.mxu0 0.0
    %519 = vmatpush2.msra.mxu0 0.0
    %520 = vmatprep.subr.mxu0 0.0
    %521 = vmatpush2.msra.mxu0 0.0
    %522 = vmatprep.mubr.f32.mxu0 0.0
    %523 = vmatmul.mubr.f32.gmra.mxu0 %v453
    %v524 = vpop.f32.mrf.mxu0
    %v525 = vadd.f32 0.0, %v524
    %v526 = vpop.f32.mrf.mxu0
    %527 = vmatprep.mubr.f32.mxu0 0.0
    %528 = vmatmul.mubr.f32.gmra.mxu0 %v456
    %v529 = vpop.f32.mrf.mxu0
    %v530 = vadd.f32 0.0, %v529
    %v531 = vpop.f32.mrf.mxu0
    %532 = vdwg.mxu0
    %v533 = vmul.f32 %v525, %v209
    %v534 = vmul.f32 %v530, %v215
    %v535 = vld [vmem:[%s6] sm:$0xff]
    %v536 = vld [vmem:[%s6 + $0x8] sm:$0xff]
    %v537 = vld [vmem:[%s6 + $0x10] sm:$0xff]
    %v538 = vld [vmem:[%s6 + $0x18] sm:$0xff]
    %v539 = vld [vmem:[%s6 + $0x20] sm:$0xff]
    %v540 = vld [vmem:[%s6 + $0x28] sm:$0xff]
    %v541 = vld [vmem:[%s6 + $0x30] sm:$0xff]
    %v542 = vld [vmem:[%s6 + $0x38] sm:$0xff]
    %v543 = vld [vmem:[%s6 + $0x40] sm:$0xff]
    %v544 = vld [vmem:[%s6 + $0x48] sm:$0xff]
    %v545 = vld [vmem:[%s6 + $0x50] sm:$0xff]
    %v546 = vld [vmem:[%s6 + $0x58] sm:$0xff]
    %v547 = vld [vmem:[%s6 + $0x60] sm:$0xff]
    %v548 = vld [vmem:[%s6 + $0x68] sm:$0xff]
    %v549 = vld [vmem:[%s6 + $0x70] sm:$0xff]
    %v550 = vld [vmem:[%s6 + $0x78] sm:$0xff]
    %551 = vmatprep.subr.mxu0 0.0
    %552 = vmatpush1.msra.mxu0 %v550
    %553 = vmatprep.subr.mxu0 0.0
    %554 = vmatpush1.msra.mxu0 %v549
    %555 = vmatprep.subr.mxu0 0.0
    %556 = vmatpush1.msra.mxu0 %v548
    %557 = vmatprep.subr.mxu0 0.0
    %558 = vmatpush1.msra.mxu0 %v547
    %559 = vmatprep.subr.mxu0 0.0
    %560 = vmatpush1.msra.mxu0 %v546
    %561 = vmatprep.subr.mxu0 0.0
    %562 = vmatpush1.msra.mxu0 %v545
    %563 = vmatprep.subr.mxu0 0.0
    %564 = vmatpush1.msra.mxu0 %v544
    %565 = vmatprep.subr.mxu0 0.0
    %566 = vmatpush1.msra.mxu0 %v543
    %567 = vmatprep.subr.mxu0 0.0
    %568 = vmatpush1.msra.mxu0 %v542
    %569 = vmatprep.subr.mxu0 0.0
    %570 = vmatpush1.msra.mxu0 %v541
    %571 = vmatprep.subr.mxu0 0.0
    %572 = vmatpush1.msra.mxu0 %v540
    %573 = vmatprep.subr.mxu0 0.0
    %574 = vmatpush1.msra.mxu0 %v539
    %575 = vmatprep.subr.mxu0 0.0
    %576 = vmatpush1.msra.mxu0 %v538
    %577 = vmatprep.subr.mxu0 0.0
    %578 = vmatpush1.msra.mxu0 %v537
    %579 = vmatprep.subr.mxu0 0.0
    %580 = vmatpush1.msra.mxu0 %v536
    %581 = vmatprep.subr.mxu0 0.0
    %582 = vmatpush1.msra.mxu0 %v535
    %583 = vmatprep.subr.mxu0 0.0
    %584 = vmatpush2.msra.mxu0 0.0
    %585 = vmatprep.subr.mxu0 0.0
    %586 = vmatpush2.msra.mxu0 0.0
    %587 = vmatprep.subr.mxu0 0.0
    %588 = vmatpush2.msra.mxu0 0.0
    %589 = vmatprep.subr.mxu0 0.0
    %590 = vmatpush2.msra.mxu0 0.0
    %591 = vmatprep.subr.mxu0 0.0
    %592 = vmatpush2.msra.mxu0 0.0
    %593 = vmatprep.subr.mxu0 0.0
    %594 = vmatpush2.msra.mxu0 0.0
    %595 = vmatprep.subr.mxu0 0.0
    %596 = vmatpush2.msra.mxu0 0.0
    %597 = vmatprep.subr.mxu0 0.0
    %598 = vmatpush2.msra.mxu0 0.0
    %599 = vmatprep.subr.mxu0 0.0
    %600 = vmatpush2.msra.mxu0 0.0
    %601 = vmatprep.subr.mxu0 0.0
    %602 = vmatpush2.msra.mxu0 0.0
    %603 = vmatprep.subr.mxu0 0.0
    %604 = vmatpush2.msra.mxu0 0.0
    %605 = vmatprep.subr.mxu0 0.0
    %606 = vmatpush2.msra.mxu0 0.0
    %607 = vmatprep.subr.mxu0 0.0
    %608 = vmatpush2.msra.mxu0 0.0
    %609 = vmatprep.subr.mxu0 0.0
    %610 = vmatpush2.msra.mxu0 0.0
    %611 = vmatprep.subr.mxu0 0.0
    %612 = vmatpush2.msra.mxu0 0.0
    %613 = vmatprep.subr.mxu0 0.0
    %614 = vmatpush2.msra.mxu0 0.0
    %615 = vmatprep.mubr.f32.mxu0 0.0
    %616 = vmatmul.mubr.f32.gmra.mxu0 %v533
    %v617 = vpop.f32.mrf.mxu0
    %v618 = vadd.f32 0.0, %v617
    %v619 = vpop.f32.mrf.mxu0
    %620 = vmatprep.mubr.f32.mxu0 0.0
    %621 = vmatmul.mubr.f32.gmra.mxu0 %v534
    %v622 = vpop.f32.mrf.mxu0
    %v623 = vadd.f32 0.0, %v622
    %v624 = vpop.f32.mrf.mxu0
    %625 = vdwg.mxu0
    %626 = vst.msk [vmem:[#allocation2] sm:$0xff] %vm33, %v618
    %627 = vst.msk [vmem:[#allocation2 + $0x8] sm:$0xff] %vm33, %v623
    // Predicated region
    $region30: #{tpu_custom_call.1} parent=1 // pred_check
      _
    $region31: #{tpu_custom_call.1} parent=1 // pred_check_branch
      %629 = sbr.rel (0) target = $region33
    $region32: #{tpu_custom_call.1} parent=1 // pred_region
      %s631 = ssub.s32 256, 256
      %632 = vsyncadd [#allocation3], %s631
      %s633 = sshll.u32 [#allocation2], 4
      %s634 = int_to_ptr.vmem [resolvable:$true] %s633
      %639 = dma.vmem_to_hbm [thread:$0]  %s634, 256, %s7, [#allocation3], 128, 128, 8
    $region33: #{tpu_custom_call.1} parent=1 // pred_fallthru
      _
    // Predicated region
    $region34: #{tpu_custom_call.1} parent=1 // pred_check
      _
    $region35: #{tpu_custom_call.1} parent=1 // pred_check_branch
      %641 = sbr.rel (0) target = $region37
    $region36: #{tpu_custom_call.1} parent=1 // pred_region
      %642 = dma.done [#allocation3], 256
    $region37: #{tpu_custom_call.1} parent=1 // pred_fallthru
      _
    %643 = vsyncpa [#allocation3], 1

</llo_original>
